<compile_context>
chip_gen: v7x
topology: tpu7x:2x2x1
jax: 0.10.0
libtpu: 0.0.40
codegen_flags: <defaults>
</compile_context>

<pallas_src>
import functools

import jax
import jax.numpy as jnp
from jax.experimental import pallas as pl
from jax.experimental.pallas import tpu as pltpu


def _round_up(x: int, m: int) -> int:
    return ((x + m - 1) // m) * m


def _gap_kernel_single(x_ref, o_ref, *, inv_hw):
    # x_ref: (TR, HW) -- whole spatial extent in one tile.
    # Accumulate in f32 without materializing an f32 copy of the tile.
    s = jnp.sum(x_ref[...], axis=-1, dtype=jnp.float32)
    o_ref[...] = (s * inv_hw).reshape(o_ref.shape).astype(o_ref.dtype)


def _gap_kernel_acc(x_ref, o_ref, acc_ref, *, inv_hw):
    # x_ref: (TR, THW); acc_ref: (1, TR) f32 scratch; o_ref: (1, TR).
    k = pl.program_id(1)

    @pl.when(k == 0)
    def _():
        acc_ref[...] = jnp.zeros_like(acc_ref)

    part = jnp.sum(x_ref[...], axis=-1, dtype=jnp.float32)
    acc_ref[...] += part.reshape(acc_ref.shape)

    @pl.when(k == pl.num_programs(1) - 1)
    def _():
        # Apply 1/HW scale only once, in the finalize branch.
        o_ref[...] = (acc_ref[...] * inv_hw).astype(o_ref.dtype)


def global_avg_pool2d(x, *, row_tile: int = 256, hw_tile: int = 2048):
    """x: (N, C, H, W) -> (N, C), matching GlobalAvgPool2d.forward."""
    n, c, h, w = x.shape
    r = n * c
    hw = h * w
    inv_hw = 1.0 / hw

    x_flat = x.reshape(r, hw)  # free reshape (contiguous)

    # Tile sizes honoring the (8, 128) layout constraint, capped for VMEM.
    tr = min(row_tile, _round_up(r, 8))
    thw = min(hw_tile, _round_up(hw, 128))

    r_pad = _round_up(r, tr)
    hw_pad = _round_up(hw, thw)
    if (r_pad, hw_pad) != (r, hw):
        # Zero padding does not change the sum; we divide by the true HW.
        x_flat = jnp.pad(x_flat, ((0, r_pad - r), (0, hw_pad - hw)))

    num_row = r_pad // tr
    num_hw = hw_pad // thw

    itemsize = x.dtype.itemsize
    cost = pl.CostEstimate(
        flops=r * hw,
        transcendentals=0,
        bytes_accessed=r * hw * itemsize + r * itemsize,
    )

    if num_hw == 1:
        # One pass over rows only: no accumulator, no reduction grid axis.
        out2d = pl.pallas_call(
            functools.partial(_gap_kernel_single, inv_hw=inv_hw),
            out_shape=jax.ShapeDtypeStruct((num_row, tr), x.dtype),
            grid=(num_row,),
            in_specs=[pl.BlockSpec((tr, hw_pad), lambda i: (i, 0))],
            out_specs=pl.BlockSpec((1, tr), lambda i: (i, 0)),
            compiler_params=pltpu.CompilerParams(
                dimension_semantics=("parallel",)),
            cost_estimate=cost,
        )(x_flat)
    else:
        # HW split with f32 accumulator; reduction axis last, 'arbitrary'.
        out2d = pl.pallas_call(
            functools.partial(_gap_kernel_acc, inv_hw=inv_hw),
            out_shape=jax.ShapeDtypeStruct((num_row, tr), x.dtype),
            grid=(num_row, num_hw),
            in_specs=[pl.BlockSpec((tr, thw), lambda i, k: (i, k))],
            out_specs=pl.BlockSpec((1, tr), lambda i, k: (i, 0)),
            scratch_shapes=[pltpu.VMEM((1, tr), jnp.float32)],
            compiler_params=pltpu.CompilerParams(
                dimension_semantics=("parallel", "arbitrary")),
            cost_estimate=cost,
        )(x_flat)

    # (num_row, tr) is row-major over padded rows -> flatten, drop padding.
    return out2d.reshape(r_pad)[:r].reshape(n, c)


if __name__ == "__main__":
    key = jax.random.PRNGKey(0)

    # Small shape consistent with the module (exercises the single-pass path).
    x = jax.random.normal(key, (2, 4, 16, 16), dtype=jnp.float32)
    out = jax.block_until_ready(global_avg_pool2d(x))
    ref = jnp.mean(x.reshape(x.shape[0], x.shape[1], -1), axis=2)
    assert out.shape == (2, 4)
    assert jnp.allclose(out, ref, atol=1e-5, rtol=1e-5)

    # Larger spatial extent (exercises the HW-split accumulator path).
    x2 = jax.random.normal(key, (2, 4, 64, 64), dtype=jnp.float32)
    out2 = jax.block_until_ready(global_avg_pool2d(x2))
    ref2 = jnp.mean(x2.reshape(x2.shape[0], x2.shape[1], -1), axis=2)
    assert out2.shape == (2, 4)
    assert jnp.allclose(out2, ref2, atol=1e-5, rtol=1e-5)

    print("KERNEL_OK")
</pallas_src>

<mosaic_0001>
module attributes {stable_mosaic.version = 11 : i64} {
  func.func @_gap_kernel_single(%arg0: i32, %arg1: memref<8x256xf32, #tpu.memory_space<vmem>>, %arg2: memref<1x8xf32, #tpu.memory_space<vmem>>) attributes {dimension_semantics = [#tpu.dimension_semantics<parallel>], iteration_bounds = array<i64: 1>, scalar_prefetch = 0 : i64, scratch_operands = 0 : i64, tpu.core_type = #tpu.core_type<tc>, window_params = [{transform_indices = @transform_0, window_bounds = array<i64: 8, 256>}, {transform_indices = @transform_1, window_bounds = array<i64: 1, 8>}]} {
    %c0 = arith.constant 0 : index
    %c0_0 = arith.constant 0 : index
    %0 = vector.load %arg1[%c0, %c0_0] : memref<8x256xf32, #tpu.memory_space<vmem>>, vector<8x256xf32>
    %cst = arith.constant dense<0.000000e+00> : vector<8xf32>
    %1 = vector.multi_reduction <add>, %0, %cst [1] : vector<8x256xf32> to vector<8xf32>
    %cst_1 = arith.constant 3.906250e-03 : f32
    %2 = vector.broadcast %cst_1 : f32 to vector<8xf32>
    %3 = arith.mulf %1, %2 : vector<8xf32>
    %4 = vector.shape_cast %3 : vector<8xf32> to vector<1x8xf32>
    %c0_2 = arith.constant 0 : index
    %c0_3 = arith.constant 0 : index
    %5 = vector.load %arg2[%c0_2, %c0_3] : memref<1x8xf32, #tpu.memory_space<vmem>>, vector<1x8xf32>
    tpu.vector_store %arg2[%c0_2, %c0_3], %4 {strides = array<i32>} : memref<1x8xf32, #tpu.memory_space<vmem>>, vector<1x8xf32>,
    return
  }
  func.func @transform_0(%arg0: i32) -> (i32, i32) {
    %c0_i32 = arith.constant 0 : i32
    %c0_i32_0 = arith.constant 0 : i32
    return %arg0, %c0_i32 : i32, i32
  }
  func.func @transform_1(%arg0: i32) -> (i32, i32) {
    %c0_i32 = arith.constant 0 : i32
    %c0_i32_0 = arith.constant 0 : i32
    return %arg0, %c0_i32 : i32, i32
  }
}

</mosaic_0001>

<llo_original>
// kernel: tpu_custom_call.1
$region0: #{tpu_custom_call.1}
  #allocation0 [shape = 'u32[]', space=smem, size = 0x4, offset = 0x4, fixed_abs, tag = 'smem constant byte address 0x4 - core index']
  #allocation1 [shape = 'u32[144,128]{1,0:T(1,128)}', space=vmem, size = 0x12000, scoped, tag = 'internal scratch']
  %s0 = inlined_call_operand.hbm [shape: f32[8,256], index: 0, kind: input, shape index: {}]
  %s1 = inlined_call_operand.hbm [shape: f32[1,8], index: 1, kind: output, shape index: {}]
  %s2 = sld [smem:[#allocation0]]
  $region18: #{tpu_custom_call.1} parent=0
    _
  %s4 = ssub.s32 1, %s2
  %s5 = scalar_select 0, %s4, %s2
  $region1: #{tpu_custom_call.1} parent=0
    #allocation2 [shape = 'u8[8192]{0}', space=vmem, size = 0x2000, scoped, tag = 'input window, operand 0, single buffered']
    #allocation3 [shape = 's32[1]{0}', space=sflag, size = 0x4, scoped, tag = 'scoped memory for tpu_custom_call.1']
    #allocation4 [shape = 's32[1]{0}', space=sflag, size = 0x4, scoped, tag = 'scoped memory for tpu_custom_call.1']
    #allocation5 [shape = 'u8[512]{0}', space=vmem, size = 0x400, scoped, tag = 'output window, operand 0, single buffered']
    %6 = vsyncpa [#allocation3], 0
    %7 = vsyncpa [#allocation4], 0
    // Predicated region
    $region2: #{tpu_custom_call.1} parent=1 // pred_check
      _
    $region3: #{tpu_custom_call.1} parent=1 // pred_check_branch
      %9 = sbr.rel (0) target = $region5
    $region4: #{tpu_custom_call.1} parent=1 // pred_region
      %s11 = ssub.s32 256, 256
      %12 = vsyncadd [#allocation3], %s11
      %s14 = sshll.u32 [#allocation2], 4
      %s15 = int_to_ptr.vmem [resolvable:$true] %s14
      %17 = dma.hbm_to_vmem [thread:$0]  %s0, 256, %s15, [#allocation3]
    $region5: #{tpu_custom_call.1} parent=1 // pred_fallthru
      _
    // Predicated region
    $region6: #{tpu_custom_call.1} parent=1 // pred_check
      _
    $region7: #{tpu_custom_call.1} parent=1 // pred_check_branch
      %19 = sbr.rel (0) target = $region9
    $region8: #{tpu_custom_call.1} parent=1 // pred_region
      %20 = dma.done [#allocation3], 256
    $region9: #{tpu_custom_call.1} parent=1 // pred_fallthru
      _
    %v21 = vld [vmem:[#allocation2] sm:$0xff]
    %v22 = vld [vmem:[#allocation2 + $0x8] sm:$0xff]
    %v23 = vadd.f32 %v21, %v22
    %24 = vadd.xlane.f32.xlu0 %v23
    %v25 = vpop.xlane.xlu0 %24
    %v26 = vmul.f32 %v25, 0.00390625
    %v28 = vlaneseq
    %v29 = vand.u32 %v28, 127
    %v30 = vlaneseq
    %v31 = vshrl.u32 %v30, 7
    %v32 = vsub.s32 %v29, %v31
    %v33 = vrot.slane %v26, %v32
    %vm35 = vcmask 57344
    %36 = vst.msk [vmem:[#allocation5] sm:$0x1] %vm35, %v33
    // Predicated region
    $region10: #{tpu_custom_call.1} parent=1 // pred_check
      _
    $region11: #{tpu_custom_call.1} parent=1 // pred_check_branch
      %38 = sbr.rel (0) target = $region13
    $region12: #{tpu_custom_call.1} parent=1 // pred_region
      %s40 = ssub.s32 16, 16
      %41 = vsyncadd [#allocation4], %s40
      %s43 = sshll.u32 [#allocation5], 4
      %s44 = int_to_ptr.vmem [resolvable:$true] %s43
      %46 = dma.vmem_to_hbm [thread:$0]  %s44, 16, %s1, [#allocation4]
    $region13: #{tpu_custom_call.1} parent=1 // pred_fallthru
      _
    // Predicated region
    $region14: #{tpu_custom_call.1} parent=1 // pred_check
      _
    $region15: #{tpu_custom_call.1} parent=1 // pred_check_branch
      %48 = sbr.rel (0) target = $region17
    $region16: #{tpu_custom_call.1} parent=1 // pred_region
      %49 = dma.done [#allocation4], 16
    $region17: #{tpu_custom_call.1} parent=1 // pred_fallthru
      _
    %50 = vsyncpa [#allocation3], 1
    %51 = vsyncpa [#allocation4], 1

</llo_original>
